<compile_context>
chip_gen: v5e
topology: v5e:2x2
jax: 0.10.0
libtpu: 0.0.40
codegen_flags: <defaults>
</compile_context>

<pallas_src>
import functools

import jax
import jax.numpy as jnp
from jax.experimental import pallas as pl
from jax.experimental.pallas import tpu as pltpu


def _round_up(n, m):
    return ((n + m - 1) // m) * m


def _sublane_multiple(dtype):
    # Sublane packing: 8 rows/vreg for 4-byte dtypes, 16 for 2-byte, 32 for 1-byte.
    return {4: 8, 2: 16, 1: 32}[jnp.dtype(dtype).itemsize]


def _vmem_budget_bytes():
    """(physical VMEM, usable budget) — leaves headroom for compiler scratch."""
    phys = 64 * 1024 * 1024  # conservative fallback = v7x per-core VMEM
    try:
        info = pltpu.get_tpu_info()
        phys = int(getattr(info, "vmem_capacity_bytes", phys))
    except Exception:
        pass
    # ~48 MiB on v7x (64 MiB phys), ~96 MiB on v5e/v6e (128 MiB phys).
    return phys, phys * 3 // 4


def _vmem_needed(tm, tk, d_in_p, d_hid_p, d_out_p, cd_sz, out_sz, need_scratch):
    """Upper-bound VMEM working set for one grid step (double-buffered blocks)."""
    return (
        2 * tm * d_in_p * cd_sz          # x row tile
        + 2 * d_in_p * tk * cd_sz        # W1 column slab
        + 2 * tk * d_out_p * cd_sz       # W2 row slab
        + 2 * d_hid_p * 4                # b1 (resident, f32)
        + 2 * d_out_p * 4                # b2 (resident, f32)
        + 2 * tm * d_out_p * out_sz      # output tile
        + (tm * d_out_p * 4 if need_scratch else 0)  # f32 accumulator scratch
        + 2 * tm * tk * 4                # live f32 hidden slab (+ cast copy)
    )


def _choose_tiles(M, d_in_p, d_hid, d_out_p, cd_sz, out_sz, need_scratch,
                  budget, sub):
    """Pick (tm, tk): tm>=512 first, then big tk, then bigger tm, within VMEM."""
    M_r = _round_up(max(M, 1), sub)
    d_hid_128 = _round_up(d_hid, 128)
    tm_opts = sorted({max(sub, min(_round_up(t, sub), M_r))
                      for t in (2048, 1024, 512, 256, 128, 64, 32, 16, 8)},
                     reverse=True)
    tk_opts = sorted({min(t, d_hid_128) for t in (1024, 512, 256, 128)},
                     reverse=True)
    combos = [(tm, tk) for tm in tm_opts for tk in tk_opts]
    combos.sort(key=lambda c: (min(c[0], 512), c[1], c[0]), reverse=True)

    tm_eff, tk_eff = tm_opts[-1], tk_opts[-1]  # smallest (fallback)
    for tm, tk in combos:
        if _vmem_needed(tm, tk, d_in_p, _round_up(d_hid, tk), d_out_p,
                        cd_sz, out_sz, need_scratch) <= budget:
            tm_eff, tk_eff = tm, tk
            break

    # Megacore (v7x: 2 TensorCores): prefer >=2 row tiles so the "parallel"
    # axis has something to shard; never shrink below 256 rows.
    if tm_eff >= M_r and M_r > 256:
        half = _round_up((M_r + 1) // 2, sub)
        if 256 <= half < tm_eff:
            tm_eff = half
    return tm_eff, tk_eff


def _ffn_kernel(x_ref, w1_ref, b1_ref, w2_ref, b2_ref, o_ref, *acc_scratch,
                n_k):
    # x_ref : (tm, d_in_p)   row tile (resident across k)
    # w1_ref: (d_in_p, tk)   W1 column slab for this k step
    # b1_ref: (1, d_hid_p)   full bias-1 (resident); sliced per slab in-kernel
    # w2_ref: (tk, d_out_p)  W2 row slab for this k step
    # b2_ref: (1, d_out_p)   bias-2 (resident)
    # o_ref : (tm, d_out_p)  output tile; doubles as f32 accumulator when f32
    # acc_scratch: optional f32 VMEM accumulator (low-precision outputs, n_k>1)
    acc_ref = acc_scratch[0] if acc_scratch else o_ref
    tk = w1_ref.shape[1]
    k = pl.program_id(1)

    if n_k == 1:
        b1_slab = b1_ref[...]
    else:
        b1_slab = b1_ref[:, pl.ds(pl.multiple_of(k * tk, 128), tk)]

    # Hidden slab: ReLU(x @ W1[:, slab] + b1[slab]) with f32 accumulation.
    h = jnp.dot(x_ref[...], w1_ref[...], preferred_element_type=jnp.float32)
    h = jnp.maximum(h + b1_slab, 0.0)

    # This slab's contribution to the output (MXU operands in compute dtype).
    part = jnp.dot(h.astype(w2_ref.dtype), w2_ref[...],
                   preferred_element_type=jnp.float32)

    if n_k == 1:
        o_ref[...] = (part + b2_ref[...]).astype(o_ref.dtype)
    else:
        @pl.when(k == 0)
        def _init():
            acc_ref[...] = jnp.zeros_like(acc_ref)

        acc_ref[...] += part

        @pl.when(k == n_k - 1)
        def _finalize():
            o_ref[...] = (acc_ref[...] + b2_ref[...]).astype(o_ref.dtype)


@functools.partial(jax.jit, static_argnames=("compute_dtype",))
def positionwise_ffn(x, w1, b1, w2, b2, *, compute_dtype=jnp.bfloat16):
    """PositionwiseFFN forward: ReLU(x @ w1 + b1) @ w2 + b2.

    x: (batch, seq, d_in); w1: (d_in, d_hid); w2: (d_hid, d_out).  Weights are
    stored (in, out), i.e. nn.Linear.weight transposed.  MXU operands are cast
    to `compute_dtype` (bf16 default) with f32 accumulation; pass
    compute_dtype=None to keep the input dtype on the MXU.  Output in x.dtype.
    """
    batch, seq, d_in = x.shape
    d_hid = w1.shape[1]
    d_out = w2.shape[1]
    M = batch * seq

    out_dtype = jnp.dtype(x.dtype)
    cd = jnp.dtype(compute_dtype) if compute_dtype is not None else out_dtype
    cd_sz = cd.itemsize
    out_sz = out_dtype.itemsize
    sub = max(_sublane_multiple(cd), 8)

    d_in_p = _round_up(d_in, 128)
    d_out_p = _round_up(d_out, 128)   # lane-dense output stores

    phys_vmem, budget = _vmem_budget_bytes()
    scratch_maybe = out_dtype != jnp.float32
    tm_eff, tk_eff = _choose_tiles(M, d_in_p, d_hid, d_out_p, cd_sz, out_sz,
                                   scratch_maybe, budget, sub)

    Mp = _round_up(max(M, 1), tm_eff)
    d_hid_p = _round_up(d_hid, tk_eff)
    n_row = Mp // tm_eff
    n_k = d_hid_p // tk_eff
    need_scratch = scratch_maybe and n_k > 1

    def pad2(a, rows, cols):
        return a if (rows == 0 and cols == 0) else jnp.pad(a, ((0, rows), (0, cols)))

    # Zero-padding is exact: padded d_in columns and W1 rows contribute 0,
    # padded hidden columns give ReLU(0)=0, padded W2 rows contribute 0.
    x2 = pad2(x.reshape(M, d_in).astype(cd), Mp - M, d_in_p - d_in)
    w1p = pad2(w1.astype(cd), d_in_p - d_in, d_hid_p - d_hid)
    w2p = pad2(w2.astype(cd), d_hid_p - d_hid, d_out_p - d_out)
    b1p = (jnp.pad(b1, (0, d_hid_p - d_hid)) if d_hid_p != d_hid else b1
           ).astype(jnp.float32).reshape(1, d_hid_p)
    b2p = (jnp.pad(b2, (0, d_out_p - d_out)) if d_out_p != d_out else b2
           ).astype(jnp.float32).reshape(1, d_out_p)

    vmem_needed = _vmem_needed(tm_eff, tk_eff, d_in_p, d_hid_p, d_out_p,
                               cd_sz, out_sz, need_scratch)
    vmem_limit = int(min(phys_vmem * 7 // 8,
                         max(vmem_needed * 5 // 4, 16 * 1024 * 1024)))

    flops = 2 * Mp * d_in_p * d_hid_p + 2 * Mp * d_hid_p * d_out_p
    bytes_accessed = (
        cd_sz * Mp * d_in_p                                        # x read
        + cd_sz * n_row * (d_in_p * d_hid_p + d_hid_p * d_out_p)   # W1/W2 streamed per row tile
        + 4 * (d_hid_p + d_out_p)                                  # biases
        + out_sz * Mp * d_out_p                                    # out write
    )

    scratch_shapes = ([pltpu.VMEM((tm_eff, d_out_p), jnp.float32)]
                      if need_scratch else [])

    out2 = pl.pallas_call(
        functools.partial(_ffn_kernel, n_k=n_k),
        out_shape=jax.ShapeDtypeStruct((Mp, d_out_p), out_dtype),
        grid_spec=pltpu.PrefetchScalarGridSpec(
            num_scalar_prefetch=0,
            grid=(n_row, n_k),
            in_specs=[
                pl.BlockSpec((tm_eff, d_in_p), lambda i, k: (i, 0)),    # x rows
                pl.BlockSpec((d_in_p, tk_eff), lambda i, k: (0, k)),    # W1 slab
                pl.BlockSpec((1, d_hid_p), lambda i, k: (0, 0)),        # b1 resident
                pl.BlockSpec((tk_eff, d_out_p), lambda i, k: (k, 0)),   # W2 slab
                pl.BlockSpec((1, d_out_p), lambda i, k: (0, 0)),        # b2 resident
            ],
            out_specs=pl.BlockSpec((tm_eff, d_out_p), lambda i, k: (i, 0)),
            scratch_shapes=scratch_shapes,
        ),
        compiler_params=pltpu.CompilerParams(
            dimension_semantics=("parallel", "arbitrary"),
            vmem_limit_bytes=vmem_limit,
        ),
        cost_estimate=pl.CostEstimate(
            flops=int(flops), transcendentals=0,
            bytes_accessed=int(bytes_accessed)),
    )(x2, w1p, b1p, w2p, b2p)

    return out2[:M, :d_out].reshape(batch, seq, d_out)


if __name__ == "__main__":
    # Module config (small, consistent with forward on (B, S, d_in)):
    input_h_size = 32
    ffn_h_size = 64
    ffn_output_size = 32
    batch, seq = 2, 8

    key = jax.random.PRNGKey(0)
    kx, kw1, kb1, kw2, kb2 = jax.random.split(key, 5)

    x = jax.random.normal(kx, (batch, seq, input_h_size), dtype=jnp.float32)
    # Deterministic synthetic parameters, stored (in, out) — see docstring.
    w1 = jax.random.normal(kw1, (input_h_size, ffn_h_size), dtype=jnp.float32) * 0.1
    b1 = jax.random.normal(kb1, (ffn_h_size,), dtype=jnp.float32) * 0.1
    w2 = jax.random.normal(kw2, (ffn_h_size, ffn_output_size), dtype=jnp.float32) * 0.1
    b2 = jax.random.normal(kb2, (ffn_output_size,), dtype=jnp.float32) * 0.1

    out = positionwise_ffn(x, w1, b1, w2, b2)
    jax.block_until_ready(out)
    assert out.shape == (batch, seq, ffn_output_size)
    assert out.dtype == x.dtype

    # Reference 1: identical precision flow (bf16 MXU operands, f32 accum).
    x2d = x.reshape(-1, input_h_size)
    h_ref = jnp.maximum(
        jnp.dot(x2d.astype(jnp.bfloat16), w1.astype(jnp.bfloat16),
                preferred_element_type=jnp.float32) + b1, 0.0)
    ref_mixed = (jnp.dot(h_ref.astype(jnp.bfloat16), w2.astype(jnp.bfloat16),
                         preferred_element_type=jnp.float32) + b2
                 ).reshape(batch, seq, ffn_output_size)
    assert jnp.allclose(out, ref_mixed, atol=1e-4, rtol=1e-4), \
        "mismatch vs mixed-precision reference"

    # Reference 2: the original f32 PyTorch math (looser tolerance because the
    # kernel runs bf16 MXU operands with f32 accumulation).
    ref_f32 = jnp.maximum(x @ w1 + b1, 0.0) @ w2 + b2
    assert jnp.allclose(out, ref_f32, atol=5e-2, rtol=5e-2), \
        "mismatch vs f32 reference"

    print("KERNEL_OK")
</pallas_src>

<mosaic_0001>
module attributes {stable_mosaic.version = 11 : i64} {
  func.func @_ffn_kernel(%arg0: i32, %arg1: i32, %arg2: memref<16x128xbf16, #tpu.memory_space<vmem>>, %arg3: memref<128x128xbf16, #tpu.memory_space<vmem>>, %arg4: memref<1x128xf32, #tpu.memory_space<vmem>>, %arg5: memref<128x128xbf16, #tpu.memory_space<vmem>>, %arg6: memref<1x128xf32, #tpu.memory_space<vmem>>, %arg7: memref<16x128xf32, #tpu.memory_space<vmem>>) attributes {dimension_semantics = [#tpu.dimension_semantics<parallel>, #tpu.dimension_semantics<arbitrary>], iteration_bounds = array<i64: 1, 1>, scalar_prefetch = 0 : i64, scratch_operands = 0 : i64, tpu.core_type = #tpu.core_type<tc>, window_params = [{transform_indices = @transform_0, window_bounds = array<i64: 16, 128>}, {transform_indices = @transform_1, window_bounds = array<i64: 128, 128>}, {pipeline_mode = #tpu.pipeline_mode<synchronous>, transform_indices = @transform_2, window_bounds = array<i64: 1, 128>}, {transform_indices = @transform_3, window_bounds = array<i64: 128, 128>}, {pipeline_mode = #tpu.pipeline_mode<synchronous>, transform_indices = @transform_4, window_bounds = array<i64: 1, 128>}, {transform_indices = @transform_5, window_bounds = array<i64: 16, 128>}]} {
    %c0 = arith.constant 0 : index
    %c0_0 = arith.constant 0 : index
    %0 = vector.load %arg4[%c0, %c0_0] : memref<1x128xf32, #tpu.memory_space<vmem>>, vector<1x128xf32>
    %c0_1 = arith.constant 0 : index
    %c0_2 = arith.constant 0 : index
    %1 = vector.load %arg2[%c0_1, %c0_2] : memref<16x128xbf16, #tpu.memory_space<vmem>>, vector<16x128xbf16>
    %c0_3 = arith.constant 0 : index
    %c0_4 = arith.constant 0 : index
    %2 = vector.load %arg3[%c0_3, %c0_4] : memref<128x128xbf16, #tpu.memory_space<vmem>>, vector<128x128xbf16>
    %cst = arith.constant dense<0.000000e+00> : vector<16x128xf32>
    %3 = tpu.matmul %1, %2, %cst {dimension_numbers = #tpu.dot_dimension_numbers<[1], [0], [0], [1], [0, 0, 1, 1], [], []>} : vector<16x128xbf16>, vector<128x128xbf16>, vector<16x128xf32> -> vector<16x128xf32>
    %4 = vector.broadcast %0 : vector<1x128xf32> to vector<16x128xf32>
    %5 = arith.addf %3, %4 : vector<16x128xf32>
    %cst_5 = arith.constant 0.000000e+00 : f32
    %6 = vector.broadcast %cst_5 : f32 to vector<16x128xf32>
    %7 = arith.maximumf %5, %6 : vector<16x128xf32>
    %8 = arith.truncf %7 : vector<16x128xf32> to vector<16x128xbf16>
    %c0_6 = arith.constant 0 : index
    %c0_7 = arith.constant 0 : index
    %9 = vector.load %arg5[%c0_6, %c0_7] : memref<128x128xbf16, #tpu.memory_space<vmem>>, vector<128x128xbf16>
    %cst_8 = arith.constant dense<0.000000e+00> : vector<16x128xf32>
    %10 = tpu.matmul %8, %9, %cst_8 {dimension_numbers = #tpu.dot_dimension_numbers<[1], [0], [0], [1], [0, 0, 1, 1], [], []>} : vector<16x128xbf16>, vector<128x128xbf16>, vector<16x128xf32> -> vector<16x128xf32>
    %c0_9 = arith.constant 0 : index
    %c0_10 = arith.constant 0 : index
    %11 = vector.load %arg6[%c0_9, %c0_10] : memref<1x128xf32, #tpu.memory_space<vmem>>, vector<1x128xf32>
    %12 = vector.broadcast %11 : vector<1x128xf32> to vector<16x128xf32>
    %13 = arith.addf %10, %12 : vector<16x128xf32>
    %c0_11 = arith.constant 0 : index
    %c0_12 = arith.constant 0 : index
    %14 = vector.load %arg7[%c0_11, %c0_12] : memref<16x128xf32, #tpu.memory_space<vmem>>, vector<16x128xf32>
    tpu.vector_store %arg7[%c0_11, %c0_12], %13 {strides = array<i32>} : memref<16x128xf32, #tpu.memory_space<vmem>>, vector<16x128xf32>,
    return
  }
  func.func @transform_0(%arg0: i32, %arg1: i32) -> (i32, i32) {
    %c0_i32 = arith.constant 0 : i32
    %c0_i32_0 = arith.constant 0 : i32
    return %arg0, %c0_i32 : i32, i32
  }
  func.func @transform_1(%arg0: i32, %arg1: i32) -> (i32, i32) {
    %c0_i32 = arith.constant 0 : i32
    %c0_i32_0 = arith.constant 0 : i32
    return %c0_i32, %arg1 : i32, i32
  }
  func.func @transform_2(%arg0: i32, %arg1: i32) -> (i32, i32) {
    %c0_i32 = arith.constant 0 : i32
    %c0_i32_0 = arith.constant 0 : i32
    %c0_i32_1 = arith.constant 0 : i32
    return %c0_i32, %c0_i32_0 : i32, i32
  }
  func.func @transform_3(%arg0: i32, %arg1: i32) -> (i32, i32) {
    %c0_i32 = arith.constant 0 : i32
    %c0_i32_0 = arith.constant 0 : i32
    return %arg1, %c0_i32 : i32, i32
  }
  func.func @transform_4(%arg0: i32, %arg1: i32) -> (i32, i32) {
    %c0_i32 = arith.constant 0 : i32
    %c0_i32_0 = arith.constant 0 : i32
    %c0_i32_1 = arith.constant 0 : i32
    return %c0_i32, %c0_i32_0 : i32, i32
  }
  func.func @transform_5(%arg0: i32, %arg1: i32) -> (i32, i32) {
    %c0_i32 = arith.constant 0 : i32
    %c0_i32_0 = arith.constant 0 : i32
    return %arg0, %c0_i32 : i32, i32
  }
}

</mosaic_0001>

<llo_original>
// kernel: positionwise_ffn.1
$region0: #{positionwise_ffn.1}
  #allocation0 [shape = 'u32[]', space=smem, size = 0x4, offset = 0x4, fixed_abs, tag = 'smem constant byte address 0x4 - core index']
  #allocation1 [shape = 'u32[72,128]{1,0:T(1,128)}', space=vmem, size = 0x9000, scoped, tag = 'internal scratch']
  %s0 = inlined_call_operand.vmem [shape: bf16[16,128], index: 0, kind: input, shape index: {}]
  %s1 = inlined_call_operand.vmem [shape: bf16[128,128], index: 1, kind: input, shape index: {}]
  %s2 = inlined_call_operand.vmem [shape: f32[1,128], index: 2, kind: input, shape index: {}]
  %s3 = inlined_call_operand.vmem [shape: bf16[128,128], index: 3, kind: input, shape index: {}]
  %s4 = inlined_call_operand.vmem [shape: f32[1,128], index: 4, kind: input, shape index: {}]
  %s5 = inlined_call_operand.vmem [shape: f32[16,128], index: 5, kind: output, shape index: {}]
  %s6 = sld [smem:[#allocation0]]
  $region30: #{positionwise_ffn.1} parent=0
    _
  %s8 = ssub.s32 1, %s6
  %s9 = scalar_select 0, %s8, %s6
  // Predicated region
  $region2: #{positionwise_ffn.1} parent=0 // pred_check
    _
  $region3: #{positionwise_ffn.1} parent=0 // pred_check_branch
    %11 = sbr.rel (0) target = $region5
  $region4: #{positionwise_ffn.1} parent=0 // pred_region
    _
  $region5: #{positionwise_ffn.1} parent=0 // pred_fallthru
    _
  // Predicated region
  $region6: #{positionwise_ffn.1} parent=0 // pred_check
    _
  $region7: #{positionwise_ffn.1} parent=0 // pred_check_branch
    %13 = sbr.rel (0) target = $region9
  $region8: #{positionwise_ffn.1} parent=0 // pred_region
    _
  $region9: #{positionwise_ffn.1} parent=0 // pred_fallthru
    _
  // Predicated region
  $region10: #{positionwise_ffn.1} parent=0 // pred_check
    _
  $region11: #{positionwise_ffn.1} parent=0 // pred_check_branch
    %15 = sbr.rel (0) target = $region13
  $region12: #{positionwise_ffn.1} parent=0 // pred_region
    _
  $region13: #{positionwise_ffn.1} parent=0 // pred_fallthru
    _
  // Predicated region
  $region14: #{positionwise_ffn.1} parent=0 // pred_check
    _
  $region15: #{positionwise_ffn.1} parent=0 // pred_check_branch
    %17 = sbr.rel (0) target = $region17
  $region16: #{positionwise_ffn.1} parent=0 // pred_region
    _
  $region17: #{positionwise_ffn.1} parent=0 // pred_fallthru
    _
  // Predicated region
  $region18: #{positionwise_ffn.1} parent=0 // pred_check
    _
  $region19: #{positionwise_ffn.1} parent=0 // pred_check_branch
    %19 = sbr.rel (0) target = $region21
  $region20: #{positionwise_ffn.1} parent=0 // pred_region
    _
  $region21: #{positionwise_ffn.1} parent=0 // pred_fallthru
    _
  %v20 = vld [vmem:[%s2] sm:$0x1]
  %v21 = vld [vmem:[%s0] sm:$0xf]
  %v22 = vld [vmem:[%s0 + $0x4] sm:$0xf]
  %v23 = vld [vmem:[%s1] sm:$0xf]
  %v24 = vld [vmem:[%s1 + $0x4] sm:$0xf]
  %v25 = vld [vmem:[%s1 + $0x8] sm:$0xf]
  %v26 = vld [vmem:[%s1 + $0xc] sm:$0xf]
  %v27 = vld [vmem:[%s1 + $0x10] sm:$0xf]
  %v28 = vld [vmem:[%s1 + $0x14] sm:$0xf]
  %v29 = vld [vmem:[%s1 + $0x18] sm:$0xf]
  %v30 = vld [vmem:[%s1 + $0x1c] sm:$0xf]
  %v31 = vld [vmem:[%s1 + $0x20] sm:$0xf]
  %v32 = vld [vmem:[%s1 + $0x24] sm:$0xf]
  %v33 = vld [vmem:[%s1 + $0x28] sm:$0xf]
  %v34 = vld [vmem:[%s1 + $0x2c] sm:$0xf]
  %v35 = vld [vmem:[%s1 + $0x30] sm:$0xf]
  %v36 = vld [vmem:[%s1 + $0x34] sm:$0xf]
  %v37 = vld [vmem:[%s1 + $0x38] sm:$0xf]
  %v38 = vld [vmem:[%s1 + $0x3c] sm:$0xf]
  %v40 = vperm.slane %v20, 0
  %v44 = vunpack.c.l.b16 %v21
  %v45 = vunpack.c.l.b16 %v22
  %v46 = vpack.c.b16 %v45, %v44
  %v64 = vunpack.c.l.b16 %v23
  %v65 = vunpack.c.l.b16 %v24
  %v66 = vunpack.c.l.b16 %v25
  %v67 = vunpack.c.l.b16 %v26
  %v68 = vunpack.c.l.b16 %v27
  %v69 = vunpack.c.l.b16 %v28
  %v70 = vunpack.c.l.b16 %v29
  %v71 = vunpack.c.l.b16 %v30
  %v72 = vunpack.c.l.b16 %v31
  %v73 = vunpack.c.l.b16 %v32
  %v74 = vunpack.c.l.b16 %v33
  %v75 = vunpack.c.l.b16 %v34
  %v76 = vunpack.c.l.b16 %v35
  %v77 = vunpack.c.l.b16 %v36
  %v78 = vunpack.c.l.b16 %v37
  %v79 = vunpack.c.l.b16 %v38
  %v80 = vpack.c.b16 %v65, %v64
  %v81 = vpack.c.b16 %v67, %v66
  %v82 = vpack.c.b16 %v69, %v68
  %v83 = vpack.c.b16 %v71, %v70
  %v84 = vpack.c.b16 %v73, %v72
  %v85 = vpack.c.b16 %v75, %v74
  %v86 = vpack.c.b16 %v77, %v76
  %v87 = vpack.c.b16 %v79, %v78
  %96 = vmatpush.bf16.msra.mxu0 %v87
  %97 = vmatpush.bf16.msra.mxu0 %v86
  %98 = vmatpush.bf16.msra.mxu0 %v85
  %99 = vmatpush.bf16.msra.mxu0 %v84
  %100 = vmatpush.bf16.msra.mxu0 %v83
  %101 = vmatpush.bf16.msra.mxu0 %v82
  %102 = vmatpush.bf16.msra.mxu0 %v81
  %103 = vmatpush.bf16.msra.mxu0 %v80
  %104 = vmatmul.bf16.gmra.mxu0 %v46
  %v105 = vpop.f32.mrf.mxu0
  %v106 = vadd.f32 %v40, %v105
  %v107 = vpop.f32.mrf.mxu0
  %v108 = vadd.f32 %v40, %v107
  %109 = vdwg.mxu0
  %v110 = vmax.f32 %v106, 0.0
  %v111 = vmax.f32 %v108, 0.0
  %v112 = vpack.c.bf16 %v111, %v110
  %v113 = vld [vmem:[%s3] sm:$0xf]
  %v114 = vld [vmem:[%s3 + $0x4] sm:$0xf]
  %v115 = vld [vmem:[%s3 + $0x8] sm:$0xf]
  %v116 = vld [vmem:[%s3 + $0xc] sm:$0xf]
  %v117 = vld [vmem:[%s3 + $0x10] sm:$0xf]
  %v118 = vld [vmem:[%s3 + $0x14] sm:$0xf]
  %v119 = vld [vmem:[%s3 + $0x18] sm:$0xf]
  %v120 = vld [vmem:[%s3 + $0x1c] sm:$0xf]
  %v121 = vld [vmem:[%s3 + $0x20] sm:$0xf]
  %v122 = vld [vmem:[%s3 + $0x24] sm:$0xf]
  %v123 = vld [vmem:[%s3 + $0x28] sm:$0xf]
  %v124 = vld [vmem:[%s3 + $0x2c] sm:$0xf]
  %v125 = vld [vmem:[%s3 + $0x30] sm:$0xf]
  %v126 = vld [vmem:[%s3 + $0x34] sm:$0xf]
  %v127 = vld [vmem:[%s3 + $0x38] sm:$0xf]
  %v128 = vld [vmem:[%s3 + $0x3c] sm:$0xf]
  %v129 = vld [vmem:[%s4] sm:$0x1]
  %v131 = vperm.slane %v129, 0
  %v149 = vunpack.c.l.b16 %v113
  %v150 = vunpack.c.l.b16 %v114
  %v151 = vunpack.c.l.b16 %v115
  %v152 = vunpack.c.l.b16 %v116
  %v153 = vunpack.c.l.b16 %v117
  %v154 = vunpack.c.l.b16 %v118
  %v155 = vunpack.c.l.b16 %v119
  %v156 = vunpack.c.l.b16 %v120
  %v157 = vunpack.c.l.b16 %v121
  %v158 = vunpack.c.l.b16 %v122
  %v159 = vunpack.c.l.b16 %v123
  %v160 = vunpack.c.l.b16 %v124
  %v161 = vunpack.c.l.b16 %v125
  %v162 = vunpack.c.l.b16 %v126
  %v163 = vunpack.c.l.b16 %v127
  %v164 = vunpack.c.l.b16 %v128
  %v165 = vpack.c.b16 %v150, %v149
  %v166 = vpack.c.b16 %v152, %v151
  %v167 = vpack.c.b16 %v154, %v153
  %v168 = vpack.c.b16 %v156, %v155
  %v169 = vpack.c.b16 %v158, %v157
  %v170 = vpack.c.b16 %v160, %v159
  %v171 = vpack.c.b16 %v162, %v161
  %v172 = vpack.c.b16 %v164, %v163
  %181 = vmatpush.bf16.msra.mxu0 %v172
  %182 = vmatpush.bf16.msra.mxu0 %v171
  %183 = vmatpush.bf16.msra.mxu0 %v170
  %184 = vmatpush.bf16.msra.mxu0 %v169
  %185 = vmatpush.bf16.msra.mxu0 %v168
  %186 = vmatpush.bf16.msra.mxu0 %v167
  %187 = vmatpush.bf16.msra.mxu0 %v166
  %188 = vmatpush.bf16.msra.mxu0 %v165
  %189 = vmatmul.bf16.gmra.mxu0 %v112
  %v190 = vpop.f32.mrf.mxu0
  %v191 = vadd.f32 %v131, %v190
  %v192 = vpop.f32.mrf.mxu0
  %v193 = vadd.f32 %v131, %v192
  %194 = vdwg.mxu0
  %195 = vst [vmem:[%s5] sm:$0xff] %v191
  %196 = vst [vmem:[%s5 + $0x8] sm:$0xff] %v193
  // Predicated region
  $region22: #{positionwise_ffn.1} parent=0 // pred_check
    _
  $region23: #{positionwise_ffn.1} parent=0 // pred_check_branch
    %198 = sbr.rel (0) target = $region25
  $region24: #{positionwise_ffn.1} parent=0 // pred_region
    _
  $region25: #{positionwise_ffn.1} parent=0 // pred_fallthru
    _
  // Predicated region
  $region26: #{positionwise_ffn.1} parent=0 // pred_check
    _
  $region27: #{positionwise_ffn.1} parent=0 // pred_check_branch
    %200 = sbr.rel (0) target = $region29
  $region28: #{positionwise_ffn.1} parent=0 // pred_region
    _
  $region29: #{positionwise_ffn.1} parent=0 // pred_fallthru
    _

</llo_original>
